<compile_context>
chip_gen: v7x
topology: tpu7x:2x2x1
jax: 0.10.0
libtpu: 0.0.40
codegen_flags: <defaults>
</compile_context>

<pallas_src>
import jax
import jax.numpy as jnp
from jax.experimental import pallas as pl
from jax.experimental.pallas import tpu as pltpu


# ---------------------------------------------------------------------------
# Kernel: full MLP forward for one batch tile.  All layer weights/biases are
# VMEM-resident grid-invariant operands; layer count is static (ref shape).
# ---------------------------------------------------------------------------
def score_network_kernel(x_ref, w_ref, b_ref, w_last_ref, b_last_ref, out_ref):
    n_hidden = w_ref.shape[0]                 # = 2*num_layers - 1
    h = x_ref[...]                            # (bt, D) bf16
    for i in range(n_hidden):                 # fully unrolled (small static L)
        res = h
        # bf16 operands into the MXU, f32 accumulation, f32 bias/ReLU/residual.
        h = jnp.dot(h.astype(jnp.bfloat16), w_ref[i],
                    preferred_element_type=jnp.float32) + b_ref[i]
        h = jnp.maximum(h, 0.0)               # ReLU (F.relu)
        if i > 0:
            h = h + res                       # residual add
    # Final Linear (hidden_dim -> output_dim): no activation, no residual.
    out_ref[...] = (jnp.dot(h.astype(jnp.bfloat16), w_last_ref[...],
                            preferred_element_type=jnp.float32)
                    + b_last_ref[...]).astype(out_ref.dtype)


# ---------------------------------------------------------------------------
# Wrapper: pads to hardware tiles, stacks params, builds BlockSpecs/grid.
# ---------------------------------------------------------------------------
def _round_up(v, m):
    return ((v + m - 1) // m) * m


def _chip_profile():
    """Best-effort chip query -> (per-core VMEM bytes, v7x-like multi-TC chip)."""
    vmem_cap = 0
    try:
        info = pltpu.get_tpu_info()
        vmem_cap = int(getattr(info, "vmem_capacity_bytes", 0) or 0)
    except Exception:
        vmem_cap = 0
    if vmem_cap <= 0:
        # Unknown chip: conservative VMEM budget, safe sequential grid semantics.
        return 64 << 20, False
    return vmem_cap, vmem_cap <= (96 << 20)   # 64 MiB/TC => v7x-like (2 TCs)


def score_network_forward(x, weights, biases, *, batch_tile=None):
    """x: (B, input_dim) f32.  weights[i]: (in_i, out_i) f32, biases[i]: (out_i,)."""
    B, in_dim = x.shape
    n_lin = len(weights)
    assert n_lin >= 2, "ScoreNetwork always has at least 2 Linear layers"
    out_dim = weights[-1].shape[1]
    n_hidden = n_lin - 1

    vmem_cap, multi_tc = _chip_profile()
    cap = min(100 << 20, (3 * vmem_cap) // 4)  # ~48 MiB on v7x, ~96 MiB on v5e/v6e

    # Common lane-aligned width D for input/hidden layers; final output padded
    # only to Do = 128 lanes (keeps the writeback lane-dense without (D, D)
    # padding the tiny last-layer weight).
    feat_dims = [in_dim] + [w.shape[1] for w in weights[:-1]]
    D = max(_round_up(d, 128) for d in feat_dims)
    Do = _round_up(out_dim, 128)

    # Stacked bf16 weight slab / f32 bias slab for the first n_lin-1 layers.
    w_stack = jnp.stack(
        [jnp.pad(w, ((0, D - w.shape[0]), (0, D - w.shape[1])))
         for w in weights[:-1]]).astype(jnp.bfloat16)
    b_stack = jnp.stack(
        [jnp.pad(b, (0, D - b.shape[0])).reshape(1, D)
         for b in biases[:-1]]).astype(jnp.float32)
    w_last = jnp.pad(weights[-1],
                     ((0, D - weights[-1].shape[0]), (0, Do - out_dim))
                     ).astype(jnp.bfloat16)
    b_last = jnp.pad(biases[-1], (0, Do - out_dim)).reshape(1, Do).astype(jnp.float32)

    # Resident parameter bytes (single-buffered grid-invariant operands).
    param_bytes = (w_stack.size * 2 + b_stack.size * 4
                   + w_last.size * 2 + b_last.size * 4)

    def tile_bytes(bt):
        return (2 * bt * D * 2          # x tile, bf16, double-buffered
                + 2 * bt * Do * 4       # out tile, f32, double-buffered
                + 4 * bt * D * 4)       # unrolled-chain f32 temporaries (h/res/casts)

    if param_bytes + tile_bytes(8) + (2 << 20) > cap:
        # TODO(synk): stream per-layer weights from HBM (memory_space=pl.ANY +
        # double-buffered make_async_copy) when the slab no longer fits VMEM.
        raise NotImplementedError(
            f"padded parameters ({param_bytes / 2**20:.1f} MiB) exceed the VMEM "
            f"budget ({cap / 2**20:.0f} MiB); weight streaming not implemented")

    # Generation-aware batch tiling.
    B_pad = _round_up(max(B, 1), 8)
    if batch_tile is None:
        if multi_tc and B_pad >= 16:
            # >=2 grid steps so CORE_PARALLEL can split the batch over 2 TCs.
            batch_tile = min(256, _round_up(-(-B_pad // 2), 8))
        else:
            # Single TC: the grid is a sequential loop -> one / few large tiles.
            batch_tile = min(512, B_pad)
    batch_tile = max(8, _round_up(min(batch_tile, B_pad), 8))
    while batch_tile > 8 and param_bytes + tile_bytes(batch_tile) + (2 << 20) > cap:
        batch_tile = max(8, _round_up(batch_tile // 2, 8))
    B_pad = _round_up(B_pad, batch_tile)

    use_core_parallel = multi_tc and (B_pad // batch_tile) >= 2
    if use_core_parallel:
        # Keep an even number of grid steps for the 2-core split.
        B_pad = _round_up(B_pad, 2 * batch_tile)
    grid = (B_pad // batch_tile,)

    # Input streamed as bf16 (the kernel feeds bf16 into the MXU anyway).
    x_p = jnp.pad(x.astype(jnp.float32),
                  ((0, B_pad - B), (0, D - in_dim))).astype(jnp.bfloat16)

    if use_core_parallel:
        dim_sem = (getattr(pltpu, "CORE_PARALLEL", "parallel"),)
    else:
        dim_sem = ("arbitrary",)

    def run(single_buffer_params):
        def invariant(shape):
            idx = lambda i: (0,) * len(shape)
            if single_buffer_params:
                return pl.BlockSpec(shape, idx, pipeline_mode=pl.Buffered(1))
            return pl.BlockSpec(shape, idx)

        in_specs = [
            pl.BlockSpec((batch_tile, D), lambda i: (i, 0)),  # x: streamed per tile
            invariant((n_hidden, D, D)),                      # hidden weights
            invariant((n_hidden, 1, D)),                      # hidden biases
            invariant((D, Do)),                               # last-layer weight
            invariant((1, Do)),                               # last-layer bias
        ]
        out_specs = pl.BlockSpec((batch_tile, Do), lambda i: (i, 0))

        buf = 1 if single_buffer_params else 2
        needed = buf * param_bytes + tile_bytes(batch_tile) + (2 << 20)
        vmem_limit = int(min(max(needed, 32 << 20), cap))

        fn = pl.pallas_call(
            score_network_kernel,
            out_shape=jax.ShapeDtypeStruct((B_pad, Do), jnp.float32),
            grid_spec=pltpu.PrefetchScalarGridSpec(
                num_scalar_prefetch=0,
                grid=grid,
                in_specs=in_specs,
                out_specs=out_specs,
            ),
            compiler_params=pltpu.CompilerParams(
                dimension_semantics=dim_sem,
                vmem_limit_bytes=vmem_limit,
            ),
        )
        return fn(x_p, w_stack, b_stack, w_last, b_last)

    try:
        out_padded = run(True)
    except Exception:
        # TODO(synk): pipeline_mode=pl.Buffered(1) rejected on this jax/libtpu
        # version; fall back to default double-buffered grid-invariant operands.
        out_padded = run(False)

    return out_padded[:B, :out_dim]


# ---------------------------------------------------------------------------
# Deterministic parameter construction (mirrors ScoreNetwork.__init__ shapes;
# weights stored pre-transposed as (in, out) so y = x @ W + b == PyTorch Linear).
# ---------------------------------------------------------------------------
def make_params(key, num_layers, input_dim, hidden_dim, output_dim=1):
    dims = []
    for i in range(num_layers):
        dims.append((input_dim, hidden_dim) if i == 0 else (hidden_dim, hidden_dim))
    for i in range(num_layers):
        dims.append((hidden_dim, output_dim) if i == num_layers - 1
                    else (hidden_dim, hidden_dim))

    weights, biases = [], []
    for (fan_in, fan_out) in dims:
        key, kw, kb = jax.random.split(key, 3)
        bound = 1.0 / jnp.sqrt(fan_in)
        w = jax.random.uniform(kw, (fan_in, fan_out), jnp.float32, -bound, bound)
        b = jax.random.uniform(kb, (fan_out,), jnp.float32, -bound, bound)
        weights.append(w)
        biases.append(b)
    return weights, biases


# ---------------------------------------------------------------------------
# References: exact f32 semantics of the PyTorch forward, and a bf16-weight
# variant that mirrors the kernel's MXU numerics (bf16 operands, f32 accum).
# ---------------------------------------------------------------------------
def score_network_ref(x, weights, biases):
    n = len(weights)
    h = x
    for i in range(n):
        res = h
        h = h @ weights[i] + biases[i]
        if i < n - 1:
            h = jax.nn.relu(h)
            if i > 0:
                h = h + res
    return h


def score_network_ref_bf16(x, weights, biases):
    n = len(weights)
    h = x
    for i in range(n):
        res = h
        h = jnp.dot(h.astype(jnp.bfloat16), weights[i].astype(jnp.bfloat16),
                    preferred_element_type=jnp.float32) + biases[i]
        if i < n - 1:
            h = jax.nn.relu(h)
            if i > 0:
                h = h + res
    return h


if __name__ == "__main__":
    # Small shapes consistent with the module's forward.
    num_layers = 2          # -> 2 * num_layers = 4 Linear layers total
    batch = 8
    input_dim = 16
    hidden_dim = 32
    output_dim = 1

    key = jax.random.PRNGKey(0)
    key, kx = jax.random.split(key)
    x = jax.random.normal(kx, (batch, input_dim), jnp.float32)
    weights, biases = make_params(key, num_layers, input_dim, hidden_dim, output_dim)

    out = jax.block_until_ready(score_network_forward(x, weights, biases))
    assert out.shape == (batch, output_dim), out.shape

    ref_bf16 = score_network_ref_bf16(x, weights, biases)   # same numerics as kernel
    ref_f32 = score_network_ref(x, weights, biases)          # exact module semantics
    assert jnp.allclose(out, ref_bf16, atol=1e-4, rtol=1e-4), (out, ref_bf16)
    assert jnp.allclose(out, ref_f32, atol=5e-2, rtol=5e-2), (out, ref_f32)

    # Multi-tile grid check: exercises batch tiling + multi-step grid.
    key, kx2 = jax.random.split(key)
    x2 = jax.random.normal(kx2, (64, input_dim), jnp.float32)
    out2 = jax.block_until_ready(
        score_network_forward(x2, weights, biases, batch_tile=16))
    ref2 = score_network_ref_bf16(x2, weights, biases)
    assert out2.shape == (64, output_dim), out2.shape
    assert jnp.allclose(out2, ref2, atol=1e-4, rtol=1e-4)

    # Auto-tiling path (no explicit batch_tile) on a larger batch.
    out3 = jax.block_until_ready(score_network_forward(x2, weights, biases))
    assert jnp.allclose(out3, ref2, atol=1e-4, rtol=1e-4)

    print("KERNEL_OK")
</pallas_src>

<mosaic_0001>
module attributes {stable_mosaic.version = 11 : i64} {
  func.func @score_network_kernel(%arg0: i32, %arg1: memref<8x128xbf16, #tpu.memory_space<vmem>>, %arg2: memref<3x128x128xbf16, #tpu.memory_space<vmem>>, %arg3: memref<3x1x128xf32, #tpu.memory_space<vmem>>, %arg4: memref<128x128xbf16, #tpu.memory_space<vmem>>, %arg5: memref<1x128xf32, #tpu.memory_space<vmem>>, %arg6: memref<8x128xf32, #tpu.memory_space<vmem>>) attributes {dimension_semantics = [#tpu.dimension_semantics<arbitrary>], iteration_bounds = array<i64: 1>, scalar_prefetch = 0 : i64, scratch_operands = 0 : i64, tpu.core_type = #tpu.core_type<tc>, window_params = [{transform_indices = @transform_0, window_bounds = array<i64: 8, 128>}, {pipeline_mode = #tpu.pipeline_mode<synchronous>, transform_indices = @transform_1, window_bounds = array<i64: 3, 128, 128>}, {pipeline_mode = #tpu.pipeline_mode<synchronous>, transform_indices = @transform_2, window_bounds = array<i64: 3, 1, 128>}, {pipeline_mode = #tpu.pipeline_mode<synchronous>, transform_indices = @transform_3, window_bounds = array<i64: 128, 128>}, {pipeline_mode = #tpu.pipeline_mode<synchronous>, transform_indices = @transform_4, window_bounds = array<i64: 1, 128>}, {transform_indices = @transform_5, window_bounds = array<i64: 8, 128>}]} {
    %c0 = arith.constant 0 : index
    %c0_0 = arith.constant 0 : index
    %0 = vector.load %arg1[%c0, %c0_0] : memref<8x128xbf16, #tpu.memory_space<vmem>>, vector<8x128xbf16>
    %c0_1 = arith.constant 0 : index
    %c0_2 = arith.constant 0 : index
    %c0_3 = arith.constant 0 : index
    %1 = vector.load %arg2[%c0_1, %c0_2, %c0_3] : memref<3x128x128xbf16, #tpu.memory_space<vmem>>, vector<1x128x128xbf16>
    %2 = vector.shape_cast %1 : vector<1x128x128xbf16> to vector<128x128xbf16>
    %cst = arith.constant dense<0.000000e+00> : vector<8x128xf32>
    %3 = tpu.matmul %0, %2, %cst {dimension_numbers = #tpu.dot_dimension_numbers<[1], [0], [0], [1], [0, 0, 1, 1], [], []>} : vector<8x128xbf16>, vector<128x128xbf16>, vector<8x128xf32> -> vector<8x128xf32>
    %c0_4 = arith.constant 0 : index
    %c0_5 = arith.constant 0 : index
    %c0_6 = arith.constant 0 : index
    %4 = vector.load %arg3[%c0_4, %c0_5, %c0_6] : memref<3x1x128xf32, #tpu.memory_space<vmem>>, vector<1x1x128xf32>
    %5 = vector.shape_cast %4 : vector<1x1x128xf32> to vector<1x128xf32>
    %6 = vector.broadcast %5 : vector<1x128xf32> to vector<8x128xf32>
    %7 = arith.addf %3, %6 : vector<8x128xf32>
    %cst_7 = arith.constant 0.000000e+00 : f32
    %8 = vector.broadcast %cst_7 : f32 to vector<8x128xf32>
    %9 = arith.maximumf %7, %8 : vector<8x128xf32>
    %10 = arith.truncf %9 : vector<8x128xf32> to vector<8x128xbf16>
    %c1 = arith.constant 1 : index
    %c0_8 = arith.constant 0 : index
    %c0_9 = arith.constant 0 : index
    %11 = vector.load %arg2[%c1, %c0_8, %c0_9] : memref<3x128x128xbf16, #tpu.memory_space<vmem>>, vector<1x128x128xbf16>
    %12 = vector.shape_cast %11 : vector<1x128x128xbf16> to vector<128x128xbf16>
    %cst_10 = arith.constant dense<0.000000e+00> : vector<8x128xf32>
    %13 = tpu.matmul %10, %12, %cst_10 {dimension_numbers = #tpu.dot_dimension_numbers<[1], [0], [0], [1], [0, 0, 1, 1], [], []>} : vector<8x128xbf16>, vector<128x128xbf16>, vector<8x128xf32> -> vector<8x128xf32>
    %c1_11 = arith.constant 1 : index
    %c0_12 = arith.constant 0 : index
    %c0_13 = arith.constant 0 : index
    %14 = vector.load %arg3[%c1_11, %c0_12, %c0_13] : memref<3x1x128xf32, #tpu.memory_space<vmem>>, vector<1x1x128xf32>
    %15 = vector.shape_cast %14 : vector<1x1x128xf32> to vector<1x128xf32>
    %16 = vector.broadcast %15 : vector<1x128xf32> to vector<8x128xf32>
    %17 = arith.addf %13, %16 : vector<8x128xf32>
    %cst_14 = arith.constant 0.000000e+00 : f32
    %18 = vector.broadcast %cst_14 : f32 to vector<8x128xf32>
    %19 = arith.maximumf %17, %18 : vector<8x128xf32>
    %20 = arith.addf %19, %9 : vector<8x128xf32>
    %21 = arith.truncf %20 : vector<8x128xf32> to vector<8x128xbf16>
    %c2 = arith.constant 2 : index
    %c0_15 = arith.constant 0 : index
    %c0_16 = arith.constant 0 : index
    %22 = vector.load %arg2[%c2, %c0_15, %c0_16] : memref<3x128x128xbf16, #tpu.memory_space<vmem>>, vector<1x128x128xbf16>
    %23 = vector.shape_cast %22 : vector<1x128x128xbf16> to vector<128x128xbf16>
    %cst_17 = arith.constant dense<0.000000e+00> : vector<8x128xf32>
    %24 = tpu.matmul %21, %23, %cst_17 {dimension_numbers = #tpu.dot_dimension_numbers<[1], [0], [0], [1], [0, 0, 1, 1], [], []>} : vector<8x128xbf16>, vector<128x128xbf16>, vector<8x128xf32> -> vector<8x128xf32>
    %c2_18 = arith.constant 2 : index
    %c0_19 = arith.constant 0 : index
    %c0_20 = arith.constant 0 : index
    %25 = vector.load %arg3[%c2_18, %c0_19, %c0_20] : memref<3x1x128xf32, #tpu.memory_space<vmem>>, vector<1x1x128xf32>
    %26 = vector.shape_cast %25 : vector<1x1x128xf32> to vector<1x128xf32>
    %27 = vector.broadcast %26 : vector<1x128xf32> to vector<8x128xf32>
    %28 = arith.addf %24, %27 : vector<8x128xf32>
    %cst_21 = arith.constant 0.000000e+00 : f32
    %29 = vector.broadcast %cst_21 : f32 to vector<8x128xf32>
    %30 = arith.maximumf %28, %29 : vector<8x128xf32>
    %31 = arith.addf %30, %20 : vector<8x128xf32>
    %32 = arith.truncf %31 : vector<8x128xf32> to vector<8x128xbf16>
    %c0_22 = arith.constant 0 : index
    %c0_23 = arith.constant 0 : index
    %33 = vector.load %arg4[%c0_22, %c0_23] : memref<128x128xbf16, #tpu.memory_space<vmem>>, vector<128x128xbf16>
    %cst_24 = arith.constant dense<0.000000e+00> : vector<8x128xf32>
    %34 = tpu.matmul %32, %33, %cst_24 {dimension_numbers = #tpu.dot_dimension_numbers<[1], [0], [0], [1], [0, 0, 1, 1], [], []>} : vector<8x128xbf16>, vector<128x128xbf16>, vector<8x128xf32> -> vector<8x128xf32>
    %c0_25 = arith.constant 0 : index
    %c0_26 = arith.constant 0 : index
    %35 = vector.load %arg5[%c0_25, %c0_26] : memref<1x128xf32, #tpu.memory_space<vmem>>, vector<1x128xf32>
    %36 = vector.broadcast %35 : vector<1x128xf32> to vector<8x128xf32>
    %37 = arith.addf %34, %36 : vector<8x128xf32>
    %c0_27 = arith.constant 0 : index
    %c0_28 = arith.constant 0 : index
    %38 = vector.load %arg6[%c0_27, %c0_28] : memref<8x128xf32, #tpu.memory_space<vmem>>, vector<8x128xf32>
    tpu.vector_store %arg6[%c0_27, %c0_28], %37 {strides = array<i32>} : memref<8x128xf32, #tpu.memory_space<vmem>>, vector<8x128xf32>,
    return
  }
  func.func @transform_0(%arg0: i32) -> (i32, i32) {
    %c0_i32 = arith.constant 0 : i32
    %c0_i32_0 = arith.constant 0 : i32
    return %arg0, %c0_i32 : i32, i32
  }
  func.func @transform_1(%arg0: i32) -> (i32, i32, i32) {
    %c0_i32 = arith.constant 0 : i32
    %c0_i32_0 = arith.constant 0 : i32
    %c0_i32_1 = arith.constant 0 : i32
    %c0_i32_2 = arith.constant 0 : i32
    return %c0_i32, %c0_i32_0, %c0_i32_1 : i32, i32, i32
  }
  func.func @transform_2(%arg0: i32) -> (i32, i32, i32) {
    %c0_i32 = arith.constant 0 : i32
    %c0_i32_0 = arith.constant 0 : i32
    %c0_i32_1 = arith.constant 0 : i32
    %c0_i32_2 = arith.constant 0 : i32
    return %c0_i32, %c0_i32_0, %c0_i32_1 : i32, i32, i32
  }
  func.func @transform_3(%arg0: i32) -> (i32, i32) {
    %c0_i32 = arith.constant 0 : i32
    %c0_i32_0 = arith.constant 0 : i32
    %c0_i32_1 = arith.constant 0 : i32
    return %c0_i32, %c0_i32_0 : i32, i32
  }
  func.func @transform_4(%arg0: i32) -> (i32, i32) {
    %c0_i32 = arith.constant 0 : i32
    %c0_i32_0 = arith.constant 0 : i32
    %c0_i32_1 = arith.constant 0 : i32
    return %c0_i32, %c0_i32_0 : i32, i32
  }
  func.func @transform_5(%arg0: i32) -> (i32, i32) {
    %c0_i32 = arith.constant 0 : i32
    %c0_i32_0 = arith.constant 0 : i32
    return %arg0, %c0_i32 : i32, i32
  }
}

module attributes {stable_mosaic.version = 11 : i64} {
  func.func @score_network_kernel(%arg0: i32, %arg1: memref<8x128xbf16, #tpu.memory_space<vmem>>, %arg2: memref<3x128x128xbf16, #tpu.memory_space<vmem>>, %arg3: memref<3x1x128xf32, #tpu.memory_space<vmem>>, %arg4: memref<128x128xbf16, #tpu.memory_space<vmem>>, %arg5: memref<1x128xf32, #tpu.memory_space<vmem>>, %arg6: memref<8x128xf32, #tpu.memory_space<vmem>>) attributes {dimension_semantics = [#tpu.dimension_semantics<arbitrary>], iteration_bounds = array<i64: 1>, scalar_prefetch = 0 : i64, scratch_operands = 0 : i64, tpu.core_type = #tpu.core_type<tc>, window_params = [{transform_indices = @transform_0, window_bounds = array<i64: 8, 128>}, {pipeline_mode = #tpu.pipeline_mode<synchronous>, transform_indices = @transform_1, window_bounds = array<i64: 3, 128, 128>}, {pipeline_mode = #tpu.pipeline_mode<synchronous>, transform_indices = @transform_2, window_bounds = array<i64: 3, 1, 128>}, {pipeline_mode = #tpu.pipeline_mode<synchronous>, transform_indices = @transform_3, window_bounds = array<i64: 128, 128>}, {pipeline_mode = #tpu.pipeline_mode<synchronous>, transform_indices = @transform_4, window_bounds = array<i64: 1, 128>}, {transform_indices = @transform_5, window_bounds = array<i64: 8, 128>}]} {
    %c0 = arith.constant 0 : index
    %c0_0 = arith.constant 0 : index
    %0 = vector.load %arg1[%c0, %c0_0] : memref<8x128xbf16, #tpu.memory_space<vmem>>, vector<8x128xbf16>
    %c0_1 = arith.constant 0 : index
    %c0_2 = arith.constant 0 : index
    %c0_3 = arith.constant 0 : index
    %1 = vector.load %arg2[%c0_1, %c0_2, %c0_3] : memref<3x128x128xbf16, #tpu.memory_space<vmem>>, vector<1x128x128xbf16>
    %2 = vector.shape_cast %1 : vector<1x128x128xbf16> to vector<128x128xbf16>
    %cst = arith.constant dense<0.000000e+00> : vector<8x128xf32>
    %3 = tpu.matmul %0, %2, %cst {dimension_numbers = #tpu.dot_dimension_numbers<[1], [0], [0], [1], [0, 0, 1, 1], [], []>} : vector<8x128xbf16>, vector<128x128xbf16>, vector<8x128xf32> -> vector<8x128xf32>
    %c0_4 = arith.constant 0 : index
    %c0_5 = arith.constant 0 : index
    %c0_6 = arith.constant 0 : index
    %4 = vector.load %arg3[%c0_4, %c0_5, %c0_6] : memref<3x1x128xf32, #tpu.memory_space<vmem>>, vector<1x1x128xf32>
    %5 = vector.shape_cast %4 : vector<1x1x128xf32> to vector<1x128xf32>
    %6 = vector.broadcast %5 : vector<1x128xf32> to vector<8x128xf32>
    %7 = arith.addf %3, %6 : vector<8x128xf32>
    %cst_7 = arith.constant 0.000000e+00 : f32
    %8 = vector.broadcast %cst_7 : f32 to vector<8x128xf32>
    %9 = arith.maximumf %7, %8 : vector<8x128xf32>
    %10 = arith.truncf %9 : vector<8x128xf32> to vector<8x128xbf16>
    %c1 = arith.constant 1 : index
    %c0_8 = arith.constant 0 : index
    %c0_9 = arith.constant 0 : index
    %11 = vector.load %arg2[%c1, %c0_8, %c0_9] : memref<3x128x128xbf16, #tpu.memory_space<vmem>>, vector<1x128x128xbf16>
    %12 = vector.shape_cast %11 : vector<1x128x128xbf16> to vector<128x128xbf16>
    %cst_10 = arith.constant dense<0.000000e+00> : vector<8x128xf32>
    %13 = tpu.matmul %10, %12, %cst_10 {dimension_numbers = #tpu.dot_dimension_numbers<[1], [0], [0], [1], [0, 0, 1, 1], [], []>} : vector<8x128xbf16>, vector<128x128xbf16>, vector<8x128xf32> -> vector<8x128xf32>
    %c1_11 = arith.constant 1 : index
    %c0_12 = arith.constant 0 : index
    %c0_13 = arith.constant 0 : index
    %14 = vector.load %arg3[%c1_11, %c0_12, %c0_13] : memref<3x1x128xf32, #tpu.memory_space<vmem>>, vector<1x1x128xf32>
    %15 = vector.shape_cast %14 : vector<1x1x128xf32> to vector<1x128xf32>
    %16 = vector.broadcast %15 : vector<1x128xf32> to vector<8x128xf32>
    %17 = arith.addf %13, %16 : vector<8x128xf32>
    %cst_14 = arith.constant 0.000000e+00 : f32
    %18 = vector.broadcast %cst_14 : f32 to vector<8x128xf32>
    %19 = arith.maximumf %17, %18 : vector<8x128xf32>
    %20 = arith.addf %19, %9 : vector<8x128xf32>
    %21 = arith.truncf %20 : vector<8x128xf32> to vector<8x128xbf16>
    %c2 = arith.constant 2 : index
    %c0_15 = arith.constant 0 : index
    %c0_16 = arith.constant 0 : index
    %22 = vector.load %arg2[%c2, %c0_15, %c0_16] : memref<3x128x128xbf16, #tpu.memory_space<vmem>>, vector<1x128x128xbf16>
    %23 = vector.shape_cast %22 : vector<1x128x128xbf16> to vector<128x128xbf16>
    %cst_17 = arith.constant dense<0.000000e+00> : vector<8x128xf32>
    %24 = tpu.matmul %21, %23, %cst_17 {dimension_numbers = #tpu.dot_dimension_numbers<[1], [0], [0], [1], [0, 0, 1, 1], [], []>} : vector<8x128xbf16>, vector<128x128xbf16>, vector<8x128xf32> -> vector<8x128xf32>
    %c2_18 = arith.constant 2 : index
    %c0_19 = arith.constant 0 : index
    %c0_20 = arith.constant 0 : index
    %25 = vector.load %arg3[%c2_18, %c0_19, %c0_20] : memref<3x1x128xf32, #tpu.memory_space<vmem>>, vector<1x1x128xf32>
    %26 = vector.shape_cast %25 : vector<1x1x128xf32> to vector<1x128xf32>
    %27 = vector.broadcast %26 : vector<1x128xf32> to vector<8x128xf32>
    %28 = arith.addf %24, %27 : vector<8x128xf32>
    %cst_21 = arith.constant 0.000000e+00 : f32
    %29 = vector.broadcast %cst_21 : f32 to vector<8x128xf32>
    %30 = arith.maximumf %28, %29 : vector<8x128xf32>
    %31 = arith.addf %30, %20 : vector<8x128xf32>
    %32 = arith.truncf %31 : vector<8x128xf32> to vector<8x128xbf16>
    %c0_22 = arith.constant 0 : index
    %c0_23 = arith.constant 0 : index
    %33 = vector.load %arg4[%c0_22, %c0_23] : memref<128x128xbf16, #tpu.memory_space<vmem>>, vector<128x128xbf16>
    %cst_24 = arith.constant dense<0.000000e+00> : vector<8x128xf32>
    %34 = tpu.matmul %32, %33, %cst_24 {dimension_numbers = #tpu.dot_dimension_numbers<[1], [0], [0], [1], [0, 0, 1, 1], [], []>} : vector<8x128xbf16>, vector<128x128xbf16>, vector<8x128xf32> -> vector<8x128xf32>
    %c0_25 = arith.constant 0 : index
    %c0_26 = arith.constant 0 : index
    %35 = vector.load %arg5[%c0_25, %c0_26] : memref<1x128xf32, #tpu.memory_space<vmem>>, vector<1x128xf32>
    %36 = vector.broadcast %35 : vector<1x128xf32> to vector<8x128xf32>
    %37 = arith.addf %34, %36 : vector<8x128xf32>
    %c0_27 = arith.constant 0 : index
    %c0_28 = arith.constant 0 : index
    %38 = vector.load %arg6[%c0_27, %c0_28] : memref<8x128xf32, #tpu.memory_space<vmem>>, vector<8x128xf32>
    tpu.vector_store %arg6[%c0_27, %c0_28], %37 {strides = array<i32>} : memref<8x128xf32, #tpu.memory_space<vmem>>, vector<8x128xf32>,
    return
  }
  func.func @transform_0(%arg0: i32) -> (i32, i32) {
    %c0_i32 = arith.constant 0 : i32
    %c0_i32_0 = arith.constant 0 : i32
    return %arg0, %c0_i32 : i32, i32
  }
  func.func @transform_1(%arg0: i32) -> (i32, i32, i32) {
    %c0_i32 = arith.constant 0 : i32
    %c0_i32_0 = arith.constant 0 : i32
    %c0_i32_1 = arith.constant 0 : i32
    %c0_i32_2 = arith.constant 0 : i32
    return %c0_i32, %c0_i32_0, %c0_i32_1 : i32, i32, i32
  }
  func.func @transform_2(%arg0: i32) -> (i32, i32, i32) {
    %c0_i32 = arith.constant 0 : i32
    %c0_i32_0 = arith.constant 0 : i32
    %c0_i32_1 = arith.constant 0 : i32
    %c0_i32_2 = arith.constant 0 : i32
    return %c0_i32, %c0_i32_0, %c0_i32_1 : i32, i32, i32
  }
  func.func @transform_3(%arg0: i32) -> (i32, i32) {
    %c0_i32 = arith.constant 0 : i32
    %c0_i32_0 = arith.constant 0 : i32
    %c0_i32_1 = arith.constant 0 : i32
    return %c0_i32, %c0_i32_0 : i32, i32
  }
  func.func @transform_4(%arg0: i32) -> (i32, i32) {
    %c0_i32 = arith.constant 0 : i32
    %c0_i32_0 = arith.constant 0 : i32
    %c0_i32_1 = arith.constant 0 : i32
    return %c0_i32, %c0_i32_0 : i32, i32
  }
  func.func @transform_5(%arg0: i32) -> (i32, i32) {
    %c0_i32 = arith.constant 0 : i32
    %c0_i32_0 = arith.constant 0 : i32
    return %arg0, %c0_i32 : i32, i32
  }
}

</mosaic_0001>

<llo_original>
// kernel: tpu_custom_call.1
$region0: #{tpu_custom_call.1}
  #allocation0 [shape = 'u32[]', space=smem, size = 0x4, offset = 0x4, fixed_abs, tag = 'smem constant byte address 0x4 - core index']
  #allocation1 [shape = 'u32[144,128]{1,0:T(1,128)}', space=vmem, size = 0x12000, scoped, tag = 'internal scratch']
  %s0 = inlined_call_operand.hbm [shape: bf16[8,128], index: 0, kind: input, shape index: {}]
  %s1 = inlined_call_operand.hbm [shape: bf16[3,128,128], index: 1, kind: input, shape index: {}]
  %s2 = inlined_call_operand.vmem [shape: f32[3,1,128], index: 2, kind: input, shape index: {}]
  %s3 = inlined_call_operand.hbm [shape: bf16[128,128], index: 3, kind: input, shape index: {}]
  %s4 = inlined_call_operand.vmem [shape: f32[1,128], index: 4, kind: input, shape index: {}]
  %s5 = inlined_call_operand.hbm [shape: f32[8,128], index: 5, kind: output, shape index: {}]
  %s6 = sld [smem:[#allocation0]]
  $region42: #{tpu_custom_call.1} parent=0
    _
  %s8 = ssub.s32 1, %s6
  %s9 = scalar_select 0, %s8, %s6
  $region1: #{tpu_custom_call.1} parent=0
    #allocation2 [shape = 'u8[2048]{0}', space=vmem, size = 0x800, scoped, tag = 'input window, operand 0, single buffered']
    #allocation3 [shape = 's32[1]{0}', space=sflag, size = 0x4, scoped, tag = 'scoped memory for tpu_custom_call.1']
    #allocation4 [shape = 's32[1]{0}', space=sflag, size = 0x4, scoped, tag = 'scoped memory for tpu_custom_call.1']
    #allocation5 [shape = 'u8[98304]{0}', space=vmem, size = 0x18000, scoped, tag = 'input window, operand 1, single buffered']
    #allocation6 [shape = 's32[1]{0}', space=sflag, size = 0x4, scoped, tag = 'scoped memory for tpu_custom_call.1']
    #allocation7 [shape = 'u8[32768]{0}', space=vmem, size = 0x8000, scoped, tag = 'input window, operand 3, single buffered']
    #allocation8 [shape = 'u8[4096]{0}', space=vmem, size = 0x1000, scoped, tag = 'output window, operand 0, single buffered']
    %10 = vsyncpa [#allocation3], 0
    %11 = vsyncpa [#allocation6], 0
    %12 = vsyncpa [#allocation4], 0
    // Predicated region
    $region2: #{tpu_custom_call.1} parent=1 // pred_check
      _
    $region3: #{tpu_custom_call.1} parent=1 // pred_check_branch
      %14 = sbr.rel (0) target = $region5
    $region4: #{tpu_custom_call.1} parent=1 // pred_region
      %s16 = ssub.s32 64, 64
      %17 = vsyncadd [#allocation3], %s16
      %s19 = sshll.u32 [#allocation2], 4
      %s20 = int_to_ptr.vmem [resolvable:$true] %s19
      %22 = dma.hbm_to_vmem [thread:$0]  %s0, 64, %s20, [#allocation3]
    $region5: #{tpu_custom_call.1} parent=1 // pred_fallthru
      _
    // Predicated region
    $region6: #{tpu_custom_call.1} parent=1 // pred_check
      _
    $region7: #{tpu_custom_call.1} parent=1 // pred_check_branch
      %24 = sbr.rel (0) target = $region9
    $region8: #{tpu_custom_call.1} parent=1 // pred_region
      %s26 = ssub.s32 3072, 3072
      %27 = vsyncadd [#allocation6], %s26
      %s28 = sshll.u32 [#allocation5], 4
      %s29 = int_to_ptr.vmem [resolvable:$true] %s28
      %34 = dma.hbm_to_vmem [thread:$0]  %s1, 3072, %s29, [#allocation6], 64, 64, 4
    $region9: #{tpu_custom_call.1} parent=1 // pred_fallthru
      _
    // Predicated region
    $region10: #{tpu_custom_call.1} parent=1 // pred_check
      _
    $region11: #{tpu_custom_call.1} parent=1 // pred_check_branch
      %36 = sbr.rel (0) target = $region13
    $region12: #{tpu_custom_call.1} parent=1 // pred_region
      _
    $region13: #{tpu_custom_call.1} parent=1 // pred_fallthru
      _
    // Predicated region
    $region14: #{tpu_custom_call.1} parent=1 // pred_check
      _
    $region15: #{tpu_custom_call.1} parent=1 // pred_check_branch
      %38 = sbr.rel (0) target = $region17
    $region16: #{tpu_custom_call.1} parent=1 // pred_region
      %s40 = ssub.s32 1024, 1024
      %41 = vsyncadd [#allocation6], %s40
      %s42 = sshll.u32 [#allocation7], 4
      %s43 = int_to_ptr.vmem [resolvable:$true] %s42
      %48 = dma.hbm_to_vmem [thread:$0]  %s3, 1024, %s43, [#allocation6], 64, 64, 4
    $region17: #{tpu_custom_call.1} parent=1 // pred_fallthru
      _
    // Predicated region
    $region18: #{tpu_custom_call.1} parent=1 // pred_check
      _
    $region19: #{tpu_custom_call.1} parent=1 // pred_check_branch
      %50 = sbr.rel (0) target = $region21
    $region20: #{tpu_custom_call.1} parent=1 // pred_region
      _
    $region21: #{tpu_custom_call.1} parent=1 // pred_fallthru
      _
    // Predicated region
    $region22: #{tpu_custom_call.1} parent=1 // pred_check
      _
    $region23: #{tpu_custom_call.1} parent=1 // pred_check_branch
      %52 = sbr.rel (0) target = $region25
    $region24: #{tpu_custom_call.1} parent=1 // pred_region
      %53 = dma.done [#allocation3], 64
    $region25: #{tpu_custom_call.1} parent=1 // pred_fallthru
      _
    // Predicated region
    $region26: #{tpu_custom_call.1} parent=1 // pred_check
      _
    $region27: #{tpu_custom_call.1} parent=1 // pred_check_branch
      %55 = sbr.rel (0) target = $region29
    $region28: #{tpu_custom_call.1} parent=1 // pred_region
      %56 = dma.done [#allocation6], 3072
    $region29: #{tpu_custom_call.1} parent=1 // pred_fallthru
      _
    // Predicated region
    $region30: #{tpu_custom_call.1} parent=1 // pred_check
      _
    $region31: #{tpu_custom_call.1} parent=1 // pred_check_branch
      %58 = sbr.rel (0) target = $region33
    $region32: #{tpu_custom_call.1} parent=1 // pred_region
      %59 = dma.done [#allocation6], 1024
    $region33: #{tpu_custom_call.1} parent=1 // pred_fallthru
      _
    %v61 = vld [vmem:[#allocation2] sm:$0xf]
    %v62 = vld [vmem:[#allocation5] sm:$0xf]
    %v63 = vld [vmem:[#allocation5 + $0x4] sm:$0xf]
    %v64 = vld [vmem:[#allocation5 + $0x8] sm:$0xf]
    %v65 = vld [vmem:[#allocation5 + $0xc] sm:$0xf]
    %v66 = vld [vmem:[#allocation5 + $0x10] sm:$0xf]
    %v67 = vld [vmem:[#allocation5 + $0x14] sm:$0xf]
    %v68 = vld [vmem:[#allocation5 + $0x18] sm:$0xf]
    %v69 = vld [vmem:[#allocation5 + $0x1c] sm:$0xf]
    %v70 = vld [vmem:[#allocation5 + $0x20] sm:$0xf]
    %v71 = vld [vmem:[#allocation5 + $0x24] sm:$0xf]
    %v72 = vld [vmem:[#allocation5 + $0x28] sm:$0xf]
    %v73 = vld [vmem:[#allocation5 + $0x2c] sm:$0xf]
    %v74 = vld [vmem:[#allocation5 + $0x30] sm:$0xf]
    %v75 = vld [vmem:[#allocation5 + $0x34] sm:$0xf]
    %v76 = vld [vmem:[#allocation5 + $0x38] sm:$0xf]
    %v77 = vld [vmem:[#allocation5 + $0x3c] sm:$0xf]
    %v78 = vld [vmem:[%s2] sm:$0x1]
    %v80 = vlaneseq
    %v81 = vshrl.u32 %v80, 7
    %v82 = vsub.s32 0, %v81
    %v83 = vrot.slane %v78, %v82
    %v101 = vunpack.c.l.b16 %v62
    %v102 = vunpack.c.l.b16 %v63
    %v103 = vunpack.c.l.b16 %v64
    %v104 = vunpack.c.l.b16 %v65
    %v105 = vunpack.c.l.b16 %v66
    %v106 = vunpack.c.l.b16 %v67
    %v107 = vunpack.c.l.b16 %v68
    %v108 = vunpack.c.l.b16 %v69
    %v109 = vunpack.c.l.b16 %v70
    %v110 = vunpack.c.l.b16 %v71
    %v111 = vunpack.c.l.b16 %v72
    %v112 = vunpack.c.l.b16 %v73
    %v113 = vunpack.c.l.b16 %v74
    %v114 = vunpack.c.l.b16 %v75
    %v115 = vunpack.c.l.b16 %v76
    %v116 = vunpack.c.l.b16 %v77
    %v117 = vpack.c.b16 %v102, %v101
    %v118 = vpack.c.b16 %v104, %v103
    %v119 = vpack.c.b16 %v106, %v105
    %v120 = vpack.c.b16 %v108, %v107
    %v121 = vpack.c.b16 %v110, %v109
    %v122 = vpack.c.b16 %v112, %v111
    %v123 = vpack.c.b16 %v114, %v113
    %v124 = vpack.c.b16 %v116, %v115
    %133 = vmatprep.subr.bf16.mxu0 0
    %134 = vmatpush1.bf16.msra.mxu0 %v117
    %135 = vmatprep.subr.bf16.mxu0 0
    %136 = vmatpush1.bf16.msra.mxu0 %v118
    %137 = vmatprep.subr.bf16.mxu0 0
    %138 = vmatpush1.bf16.msra.mxu0 %v119
    %139 = vmatprep.subr.bf16.mxu0 0
    %140 = vmatpush1.bf16.msra.mxu0 %v120
    %141 = vmatprep.subr.bf16.mxu0 0
    %142 = vmatpush1.bf16.msra.mxu0 %v121
    %143 = vmatprep.subr.bf16.mxu0 0
    %144 = vmatpush1.bf16.msra.mxu0 %v122
    %145 = vmatprep.subr.bf16.mxu0 0
    %146 = vmatpush1.bf16.msra.mxu0 %v123
    %147 = vmatprep.subr.bf16.mxu0 0
    %148 = vmatpush1.bf16.msra.mxu0 %v124
    %149 = vmatprep.subr.bf16.mxu0 0
    %150 = vmatpush1.bf16.msra.mxu0 0
    %151 = vmatprep.subr.bf16.mxu0 0
    %152 = vmatpush1.bf16.msra.mxu0 0
    %153 = vmatprep.subr.bf16.mxu0 0
    %154 = vmatpush1.bf16.msra.mxu0 0
    %155 = vmatprep.subr.bf16.mxu0 0
    %156 = vmatpush1.bf16.msra.mxu0 0
    %157 = vmatprep.subr.bf16.mxu0 0
    %158 = vmatpush1.bf16.msra.mxu0 0
    %159 = vmatprep.subr.bf16.mxu0 0
    %160 = vmatpush1.bf16.msra.mxu0 0
    %161 = vmatprep.subr.bf16.mxu0 0
    %162 = vmatpush1.bf16.msra.mxu0 0
    %163 = vmatprep.subr.bf16.mxu0 0
    %164 = vmatpush1.bf16.msra.mxu0 0
    %165 = vmatprep.mubr.bf16.mxu0 0
    %166 = vmatmul.mubr.bf16.gmra.mrb[0].mxu0 %v61
    %v167 = vpop.f32.mrb[0].mxu0
    %v168 = vadd.f32 %v83, %v167
    %v169 = vpop.f32.mrb[0].mxu0
    %v170 = vpop.f32.mrb[0].mxu0
    %v171 = vpop.f32.mrb[0].mxu0
    %172 = vdwg.mxu0
    %v173 = vmax.f32 %v168, 0.0
    %v174 = vpack.c.bf16 %v173, %v173
    %s175 = scalar_lea.vmem [#allocation5], 64
    %v176 = vld [vmem:[%s175] sm:$0xf]
    %v177 = vld [vmem:[%s175 + $0x4] sm:$0xf]
    %v178 = vld [vmem:[%s175 + $0x8] sm:$0xf]
    %v179 = vld [vmem:[%s175 + $0xc] sm:$0xf]
    %v180 = vld [vmem:[%s175 + $0x10] sm:$0xf]
    %v181 = vld [vmem:[%s175 + $0x14] sm:$0xf]
    %v182 = vld [vmem:[%s175 + $0x18] sm:$0xf]
    %v183 = vld [vmem:[%s175 + $0x1c] sm:$0xf]
    %v184 = vld [vmem:[%s175 + $0x20] sm:$0xf]
    %v185 = vld [vmem:[%s175 + $0x24] sm:$0xf]
    %v186 = vld [vmem:[%s175 + $0x28] sm:$0xf]
    %v187 = vld [vmem:[%s175 + $0x2c] sm:$0xf]
    %v188 = vld [vmem:[%s175 + $0x30] sm:$0xf]
    %v189 = vld [vmem:[%s175 + $0x34] sm:$0xf]
    %v190 = vld [vmem:[%s175 + $0x38] sm:$0xf]
    %v191 = vld [vmem:[%s175 + $0x3c] sm:$0xf]
    %s192 = scalar_lea.vmem %s2, 1
    %v193 = vld [vmem:[%s192] sm:$0x1]
    %v195 = vlaneseq
    %v196 = vshrl.u32 %v195, 7
    %v197 = vsub.s32 0, %v196
    %v198 = vrot.slane %v193, %v197
    %v216 = vunpack.c.l.b16 %v176
    %v217 = vunpack.c.l.b16 %v177
    %v218 = vunpack.c.l.b16 %v178
    %v219 = vunpack.c.l.b16 %v179
    %v220 = vunpack.c.l.b16 %v180
    %v221 = vunpack.c.l.b16 %v181
    %v222 = vunpack.c.l.b16 %v182
    %v223 = vunpack.c.l.b16 %v183
    %v224 = vunpack.c.l.b16 %v184
    %v225 = vunpack.c.l.b16 %v185
    %v226 = vunpack.c.l.b16 %v186
    %v227 = vunpack.c.l.b16 %v187
    %v228 = vunpack.c.l.b16 %v188
    %v229 = vunpack.c.l.b16 %v189
    %v230 = vunpack.c.l.b16 %v190
    %v231 = vunpack.c.l.b16 %v191
    %v232 = vpack.c.b16 %v217, %v216
    %v233 = vpack.c.b16 %v219, %v218
    %v234 = vpack.c.b16 %v221, %v220
    %v235 = vpack.c.b16 %v223, %v222
    %v236 = vpack.c.b16 %v225, %v224
    %v237 = vpack.c.b16 %v227, %v226
    %v238 = vpack.c.b16 %v229, %v228
    %v239 = vpack.c.b16 %v231, %v230
    %248 = vmatprep.subr.bf16.mxu0 0
    %249 = vmatpush1.bf16.msra.mxu0 %v232
    %250 = vmatprep.subr.bf16.mxu0 0
    %251 = vmatpush1.bf16.msra.mxu0 %v233
    %252 = vmatprep.subr.bf16.mxu0 0
    %253 = vmatpush1.bf16.msra.mxu0 %v234
    %254 = vmatprep.subr.bf16.mxu0 0
    %255 = vmatpush1.bf16.msra.mxu0 %v235
    %256 = vmatprep.subr.bf16.mxu0 0
    %257 = vmatpush1.bf16.msra.mxu0 %v236
    %258 = vmatprep.subr.bf16.mxu0 0
    %259 = vmatpush1.bf16.msra.mxu0 %v237
    %260 = vmatprep.subr.bf16.mxu0 0
    %261 = vmatpush1.bf16.msra.mxu0 %v238
    %262 = vmatprep.subr.bf16.mxu0 0
    %263 = vmatpush1.bf16.msra.mxu0 %v239
    %264 = vmatprep.subr.bf16.mxu0 0
    %265 = vmatpush1.bf16.msra.mxu0 0
    %266 = vmatprep.subr.bf16.mxu0 0
    %267 = vmatpush1.bf16.msra.mxu0 0
    %268 = vmatprep.subr.bf16.mxu0 0
    %269 = vmatpush1.bf16.msra.mxu0 0
    %270 = vmatprep.subr.bf16.mxu0 0
    %271 = vmatpush1.bf16.msra.mxu0 0
    %272 = vmatprep.subr.bf16.mxu0 0
    %273 = vmatpush1.bf16.msra.mxu0 0
    %274 = vmatprep.subr.bf16.mxu0 0
    %275 = vmatpush1.bf16.msra.mxu0 0
    %276 = vmatprep.subr.bf16.mxu0 0
    %277 = vmatpush1.bf16.msra.mxu0 0
    %278 = vmatprep.subr.bf16.mxu0 0
    %279 = vmatpush1.bf16.msra.mxu0 0
    %280 = vmatprep.mubr.bf16.mxu0 0
    %281 = vmatmul.mubr.bf16.gmra.mrb[0].mxu0 %v174
    %v282 = vpop.f32.mrb[0].mxu0
    %v283 = vadd.f32 %v198, %v282
    %v284 = vpop.f32.mrb[0].mxu0
    %v285 = vpop.f32.mrb[0].mxu0
    %v286 = vpop.f32.mrb[0].mxu0
    %287 = vdwg.mxu0
    %v288 = vmax.f32 %v283, 0.0
    %v289 = vadd.f32 %v288, %v173
    %v290 = vpack.c.bf16 %v289, %v289
    %s291 = scalar_lea.vmem [#allocation5], 128
    %v292 = vld [vmem:[%s291] sm:$0xf]
    %v293 = vld [vmem:[%s291 + $0x4] sm:$0xf]
    %v294 = vld [vmem:[%s291 + $0x8] sm:$0xf]
    %v295 = vld [vmem:[%s291 + $0xc] sm:$0xf]
    %v296 = vld [vmem:[%s291 + $0x10] sm:$0xf]
    %v297 = vld [vmem:[%s291 + $0x14] sm:$0xf]
    %v298 = vld [vmem:[%s291 + $0x18] sm:$0xf]
    %v299 = vld [vmem:[%s291 + $0x1c] sm:$0xf]
    %v300 = vld [vmem:[%s291 + $0x20] sm:$0xf]
    %v301 = vld [vmem:[%s291 + $0x24] sm:$0xf]
    %v302 = vld [vmem:[%s291 + $0x28] sm:$0xf]
    %v303 = vld [vmem:[%s291 + $0x2c] sm:$0xf]
    %v304 = vld [vmem:[%s291 + $0x30] sm:$0xf]
    %v305 = vld [vmem:[%s291 + $0x34] sm:$0xf]
    %v306 = vld [vmem:[%s291 + $0x38] sm:$0xf]
    %v307 = vld [vmem:[%s291 + $0x3c] sm:$0xf]
    %s308 = scalar_lea.vmem %s2, 2
    %v309 = vld [vmem:[%s308] sm:$0x1]
    %v311 = vlaneseq
    %v312 = vshrl.u32 %v311, 7
    %v313 = vsub.s32 0, %v312
    %v314 = vrot.slane %v309, %v313
    %v332 = vunpack.c.l.b16 %v292
    %v333 = vunpack.c.l.b16 %v293
    %v334 = vunpack.c.l.b16 %v294
    %v335 = vunpack.c.l.b16 %v295
    %v336 = vunpack.c.l.b16 %v296
    %v337 = vunpack.c.l.b16 %v297
    %v338 = vunpack.c.l.b16 %v298
    %v339 = vunpack.c.l.b16 %v299
    %v340 = vunpack.c.l.b16 %v300
    %v341 = vunpack.c.l.b16 %v301
    %v342 = vunpack.c.l.b16 %v302
    %v343 = vunpack.c.l.b16 %v303
    %v344 = vunpack.c.l.b16 %v304
    %v345 = vunpack.c.l.b16 %v305
    %v346 = vunpack.c.l.b16 %v306
    %v347 = vunpack.c.l.b16 %v307
    %v348 = vpack.c.b16 %v333, %v332
    %v349 = vpack.c.b16 %v335, %v334
    %v350 = vpack.c.b16 %v337, %v336
    %v351 = vpack.c.b16 %v339, %v338
    %v352 = vpack.c.b16 %v341, %v340
    %v353 = vpack.c.b16 %v343, %v342
    %v354 = vpack.c.b16 %v345, %v344
    %v355 = vpack.c.b16 %v347, %v346
    %364 = vmatprep.subr.bf16.mxu0 0
    %365 = vmatpush1.bf16.msra.mxu0 %v348
    %366 = vmatprep.subr.bf16.mxu0 0
    %367 = vmatpush1.bf16.msra.mxu0 %v349
    %368 = vmatprep.subr.bf16.mxu0 0
    %369 = vmatpush1.bf16.msra.mxu0 %v350
    %370 = vmatprep.subr.bf16.mxu0 0
    %371 = vmatpush1.bf16.msra.mxu0 %v351
    %372 = vmatprep.subr.bf16.mxu0 0
    %373 = vmatpush1.bf16.msra.mxu0 %v352
    %374 = vmatprep.subr.bf16.mxu0 0
    %375 = vmatpush1.bf16.msra.mxu0 %v353
    %376 = vmatprep.subr.bf16.mxu0 0
    %377 = vmatpush1.bf16.msra.mxu0 %v354
    %378 = vmatprep.subr.bf16.mxu0 0
    %379 = vmatpush1.bf16.msra.mxu0 %v355
    %380 = vmatprep.subr.bf16.mxu0 0
    %381 = vmatpush1.bf16.msra.mxu0 0
    %382 = vmatprep.subr.bf16.mxu0 0
    %383 = vmatpush1.bf16.msra.mxu0 0
    %384 = vmatprep.subr.bf16.mxu0 0
    %385 = vmatpush1.bf16.msra.mxu0 0
    %386 = vmatprep.subr.bf16.mxu0 0
    %387 = vmatpush1.bf16.msra.mxu0 0
    %388 = vmatprep.subr.bf16.mxu0 0
    %389 = vmatpush1.bf16.msra.mxu0 0
    %390 = vmatprep.subr.bf16.mxu0 0
    %391 = vmatpush1.bf16.msra.mxu0 0
    %392 = vmatprep.subr.bf16.mxu0 0
    %393 = vmatpush1.bf16.msra.mxu0 0
    %394 = vmatprep.subr.bf16.mxu0 0
    %395 = vmatpush1.bf16.msra.mxu0 0
    %396 = vmatprep.mubr.bf16.mxu0 0
    %397 = vmatmul.mubr.bf16.gmra.mrb[0].mxu0 %v290
    %v398 = vpop.f32.mrb[0].mxu0
    %v399 = vadd.f32 %v314, %v398
    %v400 = vpop.f32.mrb[0].mxu0
    %v401 = vpop.f32.mrb[0].mxu0
    %v402 = vpop.f32.mrb[0].mxu0
    %403 = vdwg.mxu0
    %v404 = vmax.f32 %v399, 0.0
    %v405 = vadd.f32 %v404, %v289
    %v406 = vpack.c.bf16 %v405, %v405
    %v407 = vld [vmem:[#allocation7] sm:$0xf]
    %v408 = vld [vmem:[#allocation7 + $0x4] sm:$0xf]
    %v409 = vld [vmem:[#allocation7 + $0x8] sm:$0xf]
    %v410 = vld [vmem:[#allocation7 + $0xc] sm:$0xf]
    %v411 = vld [vmem:[#allocation7 + $0x10] sm:$0xf]
    %v412 = vld [vmem:[#allocation7 + $0x14] sm:$0xf]
    %v413 = vld [vmem:[#allocation7 + $0x18] sm:$0xf]
    %v414 = vld [vmem:[#allocation7 + $0x1c] sm:$0xf]
    %v415 = vld [vmem:[#allocation7 + $0x20] sm:$0xf]
    %v416 = vld [vmem:[#allocation7 + $0x24] sm:$0xf]
    %v417 = vld [vmem:[#allocation7 + $0x28] sm:$0xf]
    %v418 = vld [vmem:[#allocation7 + $0x2c] sm:$0xf]
    %v419 = vld [vmem:[#allocation7 + $0x30] sm:$0xf]
    %v420 = vld [vmem:[#allocation7 + $0x34] sm:$0xf]
    %v421 = vld [vmem:[#allocation7 + $0x38] sm:$0xf]
    %v422 = vld [vmem:[#allocation7 + $0x3c] sm:$0xf]
    %v423 = vld [vmem:[%s4] sm:$0x1]
    %v425 = vlaneseq
    %v426 = vshrl.u32 %v425, 7
    %v427 = vsub.s32 0, %v426
    %v428 = vrot.slane %v423, %v427
    %v446 = vunpack.c.l.b16 %v407
    %v447 = vunpack.c.l.b16 %v408
    %v448 = vunpack.c.l.b16 %v409
    %v449 = vunpack.c.l.b16 %v410
    %v450 = vunpack.c.l.b16 %v411
    %v451 = vunpack.c.l.b16 %v412
    %v452 = vunpack.c.l.b16 %v413
    %v453 = vunpack.c.l.b16 %v414
    %v454 = vunpack.c.l.b16 %v415
    %v455 = vunpack.c.l.b16 %v416
    %v456 = vunpack.c.l.b16 %v417
    %v457 = vunpack.c.l.b16 %v418
    %v458 = vunpack.c.l.b16 %v419
    %v459 = vunpack.c.l.b16 %v420
    %v460 = vunpack.c.l.b16 %v421
    %v461 = vunpack.c.l.b16 %v422
    %v462 = vpack.c.b16 %v447, %v446
    %v463 = vpack.c.b16 %v449, %v448
    %v464 = vpack.c.b16 %v451, %v450
    %v465 = vpack.c.b16 %v453, %v452
    %v466 = vpack.c.b16 %v455, %v454
    %v467 = vpack.c.b16 %v457, %v456
    %v468 = vpack.c.b16 %v459, %v458
    %v469 = vpack.c.b16 %v461, %v460
    %478 = vmatprep.subr.bf16.mxu0 0
    %479 = vmatpush1.bf16.msra.mxu0 %v462
    %480 = vmatprep.subr.bf16.mxu0 0
    %481 = vmatpush1.bf16.msra.mxu0 %v463
    %482 = vmatprep.subr.bf16.mxu0 0
    %483 = vmatpush1.bf16.msra.mxu0 %v464
    %484 = vmatprep.subr.bf16.mxu0 0
    %485 = vmatpush1.bf16.msra.mxu0 %v465
    %486 = vmatprep.subr.bf16.mxu0 0
    %487 = vmatpush1.bf16.msra.mxu0 %v466
    %488 = vmatprep.subr.bf16.mxu0 0
    %489 = vmatpush1.bf16.msra.mxu0 %v467
    %490 = vmatprep.subr.bf16.mxu0 0
    %491 = vmatpush1.bf16.msra.mxu0 %v468
    %492 = vmatprep.subr.bf16.mxu0 0
    %493 = vmatpush1.bf16.msra.mxu0 %v469
    %494 = vmatprep.subr.bf16.mxu0 0
    %495 = vmatpush1.bf16.msra.mxu0 0
    %496 = vmatprep.subr.bf16.mxu0 0
    %497 = vmatpush1.bf16.msra.mxu0 0
    %498 = vmatprep.subr.bf16.mxu0 0
    %499 = vmatpush1.bf16.msra.mxu0 0
    %500 = vmatprep.subr.bf16.mxu0 0
    %501 = vmatpush1.bf16.msra.mxu0 0
    %502 = vmatprep.subr.bf16.mxu0 0
    %503 = vmatpush1.bf16.msra.mxu0 0
    %504 = vmatprep.subr.bf16.mxu0 0
    %505 = vmatpush1.bf16.msra.mxu0 0
    %506 = vmatprep.subr.bf16.mxu0 0
    %507 = vmatpush1.bf16.msra.mxu0 0
    %508 = vmatprep.subr.bf16.mxu0 0
    %509 = vmatpush1.bf16.msra.mxu0 0
    %510 = vmatprep.mubr.bf16.mxu0 0
    %511 = vmatmul.mubr.bf16.gmra.mrb[0].mxu0 %v406
    %v512 = vpop.f32.mrb[0].mxu0
    %v513 = vadd.f32 %v428, %v512
    %v514 = vpop.f32.mrb[0].mxu0
    %v515 = vpop.f32.mrb[0].mxu0
    %v516 = vpop.f32.mrb[0].mxu0
    %517 = vdwg.mxu0
    %518 = vst [vmem:[#allocation8] sm:$0xff] %v513
    // Predicated region
    $region34: #{tpu_custom_call.1} parent=1 // pred_check
      _
    $region35: #{tpu_custom_call.1} parent=1 // pred_check_branch
      %520 = sbr.rel (0) target = $region37
    $region36: #{tpu_custom_call.1} parent=1 // pred_region
      %s522 = ssub.s32 128, 128
      %523 = vsyncadd [#allocation4], %s522
      %s525 = sshll.u32 [#allocation8], 4
      %s526 = int_to_ptr.vmem [resolvable:$true] %s525
      %528 = dma.vmem_to_hbm [thread:$0]  %s526, 128, %s5, [#allocation4]
    $region37: #{tpu_custom_call.1} parent=1 // pred_fallthru
      _
    // Predicated region
    $region38: #{tpu_custom_call.1} parent=1 // pred_check
      _
    $region39: #{tpu_custom_call.1} parent=1 // pred_check_branch
      %530 = sbr.rel (0) target = $region41
    $region40: #{tpu_custom_call.1} parent=1 // pred_region
      %531 = dma.done [#allocation4], 128
    $region41: #{tpu_custom_call.1} parent=1 // pred_fallthru
      _
    %532 = vsyncpa [#allocation3], 1
    %533 = vsyncpa [#allocation6], 1
    %534 = vsyncpa [#allocation4], 1

// kernel: tpu_custom_call.1
$region0: #{tpu_custom_call.1}
  #allocation0 [shape = 'u32[]', space=smem, size = 0x4, offset = 0x4, fixed_abs, tag = 'smem constant byte address 0x4 - core index']
  #allocation1 [shape = 'u32[144,128]{1,0:T(1,128)}', space=vmem, size = 0x12000, scoped, tag = 'internal scratch']
  %s0 = inlined_call_operand.hbm [shape: bf16[8,128], index: 0, kind: input, shape index: {}]
  %s1 = inlined_call_operand.hbm [shape: bf16[3,128,128], index: 1, kind: input, shape index: {}]
  %s2 = inlined_call_operand.vmem [shape: f32[3,1,128], index: 2, kind: input, shape index: {}]
  %s3 = inlined_call_operand.hbm [shape: bf16[128,128], index: 3, kind: input, shape index: {}]
  %s4 = inlined_call_operand.vmem [shape: f32[1,128], index: 4, kind: input, shape index: {}]
  %s5 = inlined_call_operand.hbm [shape: f32[8,128], index: 5, kind: output, shape index: {}]
  %s6 = sld [smem:[#allocation0]]
  $region42: #{tpu_custom_call.1} parent=0
    _
  %s8 = ssub.s32 1, %s6
  %s9 = scalar_select 0, %s8, %s6
  $region1: #{tpu_custom_call.1} parent=0
    #allocation2 [shape = 'u8[2048]{0}', space=vmem, size = 0x800, scoped, tag = 'input window, operand 0, single buffered']
    #allocation3 [shape = 's32[1]{0}', space=sflag, size = 0x4, scoped, tag = 'scoped memory for tpu_custom_call.1']
    #allocation4 [shape = 's32[1]{0}', space=sflag, size = 0x4, scoped, tag = 'scoped memory for tpu_custom_call.1']
    #allocation5 [shape = 'u8[98304]{0}', space=vmem, size = 0x18000, scoped, tag = 'input window, operand 1, single buffered']
    #allocation6 [shape = 's32[1]{0}', space=sflag, size = 0x4, scoped, tag = 'scoped memory for tpu_custom_call.1']
    #allocation7 [shape = 'u8[32768]{0}', space=vmem, size = 0x8000, scoped, tag = 'input window, operand 3, single buffered']
    #allocation8 [shape = 'u8[4096]{0}', space=vmem, size = 0x1000, scoped, tag = 'output window, operand 0, single buffered']
    %10 = vsyncpa [#allocation3], 0
    %11 = vsyncpa [#allocation6], 0
    %12 = vsyncpa [#allocation4], 0
    // Predicated region
    $region2: #{tpu_custom_call.1} parent=1 // pred_check
      _
    $region3: #{tpu_custom_call.1} parent=1 // pred_check_branch
      %14 = sbr.rel (0) target = $region5
    $region4: #{tpu_custom_call.1} parent=1 // pred_region
      %s16 = ssub.s32 64, 64
      %17 = vsyncadd [#allocation3], %s16
      %s19 = sshll.u32 [#allocation2], 4
      %s20 = int_to_ptr.vmem [resolvable:$true] %s19
      %22 = dma.hbm_to_vmem [thread:$0]  %s0, 64, %s20, [#allocation3]
    $region5: #{tpu_custom_call.1} parent=1 // pred_fallthru
      _
    // Predicated region
    $region6: #{tpu_custom_call.1} parent=1 // pred_check
      _
    $region7: #{tpu_custom_call.1} parent=1 // pred_check_branch
      %24 = sbr.rel (0) target = $region9
    $region8: #{tpu_custom_call.1} parent=1 // pred_region
      %s26 = ssub.s32 3072, 3072
      %27 = vsyncadd [#allocation6], %s26
      %s28 = sshll.u32 [#allocation5], 4
      %s29 = int_to_ptr.vmem [resolvable:$true] %s28
      %34 = dma.hbm_to_vmem [thread:$0]  %s1, 3072, %s29, [#allocation6], 64, 64, 4
    $region9: #{tpu_custom_call.1} parent=1 // pred_fallthru
      _
    // Predicated region
    $region10: #{tpu_custom_call.1} parent=1 // pred_check
      _
    $region11: #{tpu_custom_call.1} parent=1 // pred_check_branch
      %36 = sbr.rel (0) target = $region13
    $region12: #{tpu_custom_call.1} parent=1 // pred_region
      _
    $region13: #{tpu_custom_call.1} parent=1 // pred_fallthru
      _
    // Predicated region
    $region14: #{tpu_custom_call.1} parent=1 // pred_check
      _
    $region15: #{tpu_custom_call.1} parent=1 // pred_check_branch
      %38 = sbr.rel (0) target = $region17
    $region16: #{tpu_custom_call.1} parent=1 // pred_region
      %s40 = ssub.s32 1024, 1024
      %41 = vsyncadd [#allocation6], %s40
      %s42 = sshll.u32 [#allocation7], 4
      %s43 = int_to_ptr.vmem [resolvable:$true] %s42
      %48 = dma.hbm_to_vmem [thread:$0]  %s3, 1024, %s43, [#allocation6], 64, 64, 4
    $region17: #{tpu_custom_call.1} parent=1 // pred_fallthru
      _
    // Predicated region
    $region18: #{tpu_custom_call.1} parent=1 // pred_check
      _
    $region19: #{tpu_custom_call.1} parent=1 // pred_check_branch
      %50 = sbr.rel (0) target = $region21
    $region20: #{tpu_custom_call.1} parent=1 // pred_region
      _
    $region21: #{tpu_custom_call.1} parent=1 // pred_fallthru
      _
    // Predicated region
    $region22: #{tpu_custom_call.1} parent=1 // pred_check
      _
    $region23: #{tpu_custom_call.1} parent=1 // pred_check_branch
      %52 = sbr.rel (0) target = $region25
    $region24: #{tpu_custom_call.1} parent=1 // pred_region
      %53 = dma.done [#allocation3], 64
    $region25: #{tpu_custom_call.1} parent=1 // pred_fallthru
      _
    // Predicated region
    $region26: #{tpu_custom_call.1} parent=1 // pred_check
      _
    $region27: #{tpu_custom_call.1} parent=1 // pred_check_branch
      %55 = sbr.rel (0) target = $region29
    $region28: #{tpu_custom_call.1} parent=1 // pred_region
      %56 = dma.done [#allocation6], 3072
    $region29: #{tpu_custom_call.1} parent=1 // pred_fallthru
      _
    // Predicated region
    $region30: #{tpu_custom_call.1} parent=1 // pred_check
      _
    $region31: #{tpu_custom_call.1} parent=1 // pred_check_branch
      %58 = sbr.rel (0) target = $region33
    $region32: #{tpu_custom_call.1} parent=1 // pred_region
      %59 = dma.done [#allocation6], 1024
    $region33: #{tpu_custom_call.1} parent=1 // pred_fallthru
      _
    %v61 = vld [vmem:[#allocation2] sm:$0xf]
    %v62 = vld [vmem:[#allocation5] sm:$0xf]
    %v63 = vld [vmem:[#allocation5 + $0x4] sm:$0xf]
    %v64 = vld [vmem:[#allocation5 + $0x8] sm:$0xf]
    %v65 = vld [vmem:[#allocation5 + $0xc] sm:$0xf]
    %v66 = vld [vmem:[#allocation5 + $0x10] sm:$0xf]
    %v67 = vld [vmem:[#allocation5 + $0x14] sm:$0xf]
    %v68 = vld [vmem:[#allocation5 + $0x18] sm:$0xf]
    %v69 = vld [vmem:[#allocation5 + $0x1c] sm:$0xf]
    %v70 = vld [vmem:[#allocation5 + $0x20] sm:$0xf]
    %v71 = vld [vmem:[#allocation5 + $0x24] sm:$0xf]
    %v72 = vld [vmem:[#allocation5 + $0x28] sm:$0xf]
    %v73 = vld [vmem:[#allocation5 + $0x2c] sm:$0xf]
    %v74 = vld [vmem:[#allocation5 + $0x30] sm:$0xf]
    %v75 = vld [vmem:[#allocation5 + $0x34] sm:$0xf]
    %v76 = vld [vmem:[#allocation5 + $0x38] sm:$0xf]
    %v77 = vld [vmem:[#allocation5 + $0x3c] sm:$0xf]
    %v78 = vld [vmem:[%s2] sm:$0x1]
    %v80 = vlaneseq
    %v81 = vshrl.u32 %v80, 7
    %v82 = vsub.s32 0, %v81
    %v83 = vrot.slane %v78, %v82
    %v101 = vunpack.c.l.b16 %v62
    %v102 = vunpack.c.l.b16 %v63
    %v103 = vunpack.c.l.b16 %v64
    %v104 = vunpack.c.l.b16 %v65
    %v105 = vunpack.c.l.b16 %v66
    %v106 = vunpack.c.l.b16 %v67
    %v107 = vunpack.c.l.b16 %v68
    %v108 = vunpack.c.l.b16 %v69
    %v109 = vunpack.c.l.b16 %v70
    %v110 = vunpack.c.l.b16 %v71
    %v111 = vunpack.c.l.b16 %v72
    %v112 = vunpack.c.l.b16 %v73
    %v113 = vunpack.c.l.b16 %v74
    %v114 = vunpack.c.l.b16 %v75
    %v115 = vunpack.c.l.b16 %v76
    %v116 = vunpack.c.l.b16 %v77
    %v117 = vpack.c.b16 %v102, %v101
    %v118 = vpack.c.b16 %v104, %v103
    %v119 = vpack.c.b16 %v106, %v105
    %v120 = vpack.c.b16 %v108, %v107
    %v121 = vpack.c.b16 %v110, %v109
    %v122 = vpack.c.b16 %v112, %v111
    %v123 = vpack.c.b16 %v114, %v113
    %v124 = vpack.c.b16 %v116, %v115
    %133 = vmatprep.subr.bf16.mxu0 0
    %134 = vmatpush1.bf16.msra.mxu0 %v117
    %135 = vmatprep.subr.bf16.mxu0 0
    %136 = vmatpush1.bf16.msra.mxu0 %v118
    %137 = vmatprep.subr.bf16.mxu0 0
    %138 = vmatpush1.bf16.msra.mxu0 %v119
    %139 = vmatprep.subr.bf16.mxu0 0
    %140 = vmatpush1.bf16.msra.mxu0 %v120
    %141 = vmatprep.subr.bf16.mxu0 0
    %142 = vmatpush1.bf16.msra.mxu0 %v121
    %143 = vmatprep.subr.bf16.mxu0 0
    %144 = vmatpush1.bf16.msra.mxu0 %v122
    %145 = vmatprep.subr.bf16.mxu0 0
    %146 = vmatpush1.bf16.msra.mxu0 %v123
    %147 = vmatprep.subr.bf16.mxu0 0
    %148 = vmatpush1.bf16.msra.mxu0 %v124
    %149 = vmatprep.subr.bf16.mxu0 0
    %150 = vmatpush1.bf16.msra.mxu0 0
    %151 = vmatprep.subr.bf16.mxu0 0
    %152 = vmatpush1.bf16.msra.mxu0 0
    %153 = vmatprep.subr.bf16.mxu0 0
    %154 = vmatpush1.bf16.msra.mxu0 0
    %155 = vmatprep.subr.bf16.mxu0 0
    %156 = vmatpush1.bf16.msra.mxu0 0
    %157 = vmatprep.subr.bf16.mxu0 0
    %158 = vmatpush1.bf16.msra.mxu0 0
    %159 = vmatprep.subr.bf16.mxu0 0
    %160 = vmatpush1.bf16.msra.mxu0 0
    %161 = vmatprep.subr.bf16.mxu0 0
    %162 = vmatpush1.bf16.msra.mxu0 0
    %163 = vmatprep.subr.bf16.mxu0 0
    %164 = vmatpush1.bf16.msra.mxu0 0
    %165 = vmatprep.mubr.bf16.mxu0 0
    %166 = vmatmul.mubr.bf16.gmra.mrb[0].mxu0 %v61
    %v167 = vpop.f32.mrb[0].mxu0
    %v168 = vadd.f32 %v83, %v167
    %v169 = vpop.f32.mrb[0].mxu0
    %v170 = vpop.f32.mrb[0].mxu0
    %v171 = vpop.f32.mrb[0].mxu0
    %172 = vdwg.mxu0
    %v173 = vmax.f32 %v168, 0.0
    %v174 = vpack.c.bf16 %v173, %v173
    %s175 = scalar_lea.vmem [#allocation5], 64
    %v176 = vld [vmem:[%s175] sm:$0xf]
    %v177 = vld [vmem:[%s175 + $0x4] sm:$0xf]
    %v178 = vld [vmem:[%s175 + $0x8] sm:$0xf]
    %v179 = vld [vmem:[%s175 + $0xc] sm:$0xf]
    %v180 = vld [vmem:[%s175 + $0x10] sm:$0xf]
    %v181 = vld [vmem:[%s175 + $0x14] sm:$0xf]
    %v182 = vld [vmem:[%s175 + $0x18] sm:$0xf]
    %v183 = vld [vmem:[%s175 + $0x1c] sm:$0xf]
    %v184 = vld [vmem:[%s175 + $0x20] sm:$0xf]
    %v185 = vld [vmem:[%s175 + $0x24] sm:$0xf]
    %v186 = vld [vmem:[%s175 + $0x28] sm:$0xf]
    %v187 = vld [vmem:[%s175 + $0x2c] sm:$0xf]
    %v188 = vld [vmem:[%s175 + $0x30] sm:$0xf]
    %v189 = vld [vmem:[%s175 + $0x34] sm:$0xf]
    %v190 = vld [vmem:[%s175 + $0x38] sm:$0xf]
    %v191 = vld [vmem:[%s175 + $0x3c] sm:$0xf]
    %s192 = scalar_lea.vmem %s2, 1
    %v193 = vld [vmem:[%s192] sm:$0x1]
    %v195 = vlaneseq
    %v196 = vshrl.u32 %v195, 7
    %v197 = vsub.s32 0, %v196
    %v198 = vrot.slane %v193, %v197
    %v216 = vunpack.c.l.b16 %v176
    %v217 = vunpack.c.l.b16 %v177
    %v218 = vunpack.c.l.b16 %v178
    %v219 = vunpack.c.l.b16 %v179
    %v220 = vunpack.c.l.b16 %v180
    %v221 = vunpack.c.l.b16 %v181
    %v222 = vunpack.c.l.b16 %v182
    %v223 = vunpack.c.l.b16 %v183
    %v224 = vunpack.c.l.b16 %v184
    %v225 = vunpack.c.l.b16 %v185
    %v226 = vunpack.c.l.b16 %v186
    %v227 = vunpack.c.l.b16 %v187
    %v228 = vunpack.c.l.b16 %v188
    %v229 = vunpack.c.l.b16 %v189
    %v230 = vunpack.c.l.b16 %v190
    %v231 = vunpack.c.l.b16 %v191
    %v232 = vpack.c.b16 %v217, %v216
    %v233 = vpack.c.b16 %v219, %v218
    %v234 = vpack.c.b16 %v221, %v220
    %v235 = vpack.c.b16 %v223, %v222
    %v236 = vpack.c.b16 %v225, %v224
    %v237 = vpack.c.b16 %v227, %v226
    %v238 = vpack.c.b16 %v229, %v228
    %v239 = vpack.c.b16 %v231, %v230
    %248 = vmatprep.subr.bf16.mxu0 0
    %249 = vmatpush1.bf16.msra.mxu0 %v232
    %250 = vmatprep.subr.bf16.mxu0 0
    %251 = vmatpush1.bf16.msra.mxu0 %v233
    %252 = vmatprep.subr.bf16.mxu0 0
    %253 = vmatpush1.bf16.msra.mxu0 %v234
    %254 = vmatprep.subr.bf16.mxu0 0
    %255 = vmatpush1.bf16.msra.mxu0 %v235
    %256 = vmatprep.subr.bf16.mxu0 0
    %257 = vmatpush1.bf16.msra.mxu0 %v236
    %258 = vmatprep.subr.bf16.mxu0 0
    %259 = vmatpush1.bf16.msra.mxu0 %v237
    %260 = vmatprep.subr.bf16.mxu0 0
    %261 = vmatpush1.bf16.msra.mxu0 %v238
    %262 = vmatprep.subr.bf16.mxu0 0
    %263 = vmatpush1.bf16.msra.mxu0 %v239
    %264 = vmatprep.subr.bf16.mxu0 0
    %265 = vmatpush1.bf16.msra.mxu0 0
    %266 = vmatprep.subr.bf16.mxu0 0
    %267 = vmatpush1.bf16.msra.mxu0 0
    %268 = vmatprep.subr.bf16.mxu0 0
    %269 = vmatpush1.bf16.msra.mxu0 0
    %270 = vmatprep.subr.bf16.mxu0 0
    %271 = vmatpush1.bf16.msra.mxu0 0
    %272 = vmatprep.subr.bf16.mxu0 0
    %273 = vmatpush1.bf16.msra.mxu0 0
    %274 = vmatprep.subr.bf16.mxu0 0
    %275 = vmatpush1.bf16.msra.mxu0 0
    %276 = vmatprep.subr.bf16.mxu0 0
    %277 = vmatpush1.bf16.msra.mxu0 0
    %278 = vmatprep.subr.bf16.mxu0 0
    %279 = vmatpush1.bf16.msra.mxu0 0
    %280 = vmatprep.mubr.bf16.mxu0 0
    %281 = vmatmul.mubr.bf16.gmra.mrb[0].mxu0 %v174
    %v282 = vpop.f32.mrb[0].mxu0
    %v283 = vadd.f32 %v198, %v282
    %v284 = vpop.f32.mrb[0].mxu0
    %v285 = vpop.f32.mrb[0].mxu0
    %v286 = vpop.f32.mrb[0].mxu0
    %287 = vdwg.mxu0
    %v288 = vmax.f32 %v283, 0.0
    %v289 = vadd.f32 %v288, %v173
    %v290 = vpack.c.bf16 %v289, %v289
    %s291 = scalar_lea.vmem [#allocation5], 128
    %v292 = vld [vmem:[%s291] sm:$0xf]
    %v293 = vld [vmem:[%s291 + $0x4] sm:$0xf]
    %v294 = vld [vmem:[%s291 + $0x8] sm:$0xf]
    %v295 = vld [vmem:[%s291 + $0xc] sm:$0xf]
    %v296 = vld [vmem:[%s291 + $0x10] sm:$0xf]
    %v297 = vld [vmem:[%s291 + $0x14] sm:$0xf]
    %v298 = vld [vmem:[%s291 + $0x18] sm:$0xf]
    %v299 = vld [vmem:[%s291 + $0x1c] sm:$0xf]
    %v300 = vld [vmem:[%s291 + $0x20] sm:$0xf]
    %v301 = vld [vmem:[%s291 + $0x24] sm:$0xf]
    %v302 = vld [vmem:[%s291 + $0x28] sm:$0xf]
    %v303 = vld [vmem:[%s291 + $0x2c] sm:$0xf]
    %v304 = vld [vmem:[%s291 + $0x30] sm:$0xf]
    %v305 = vld [vmem:[%s291 + $0x34] sm:$0xf]
    %v306 = vld [vmem:[%s291 + $0x38] sm:$0xf]
    %v307 = vld [vmem:[%s291 + $0x3c] sm:$0xf]
    %s308 = scalar_lea.vmem %s2, 2
    %v309 = vld [vmem:[%s308] sm:$0x1]
    %v311 = vlaneseq
    %v312 = vshrl.u32 %v311, 7
    %v313 = vsub.s32 0, %v312
    %v314 = vrot.slane %v309, %v313
    %v332 = vunpack.c.l.b16 %v292
    %v333 = vunpack.c.l.b16 %v293
    %v334 = vunpack.c.l.b16 %v294
    %v335 = vunpack.c.l.b16 %v295
    %v336 = vunpack.c.l.b16 %v296
    %v337 = vunpack.c.l.b16 %v297
    %v338 = vunpack.c.l.b16 %v298
    %v339 = vunpack.c.l.b16 %v299
    %v340 = vunpack.c.l.b16 %v300
    %v341 = vunpack.c.l.b16 %v301
    %v342 = vunpack.c.l.b16 %v302
    %v343 = vunpack.c.l.b16 %v303
    %v344 = vunpack.c.l.b16 %v304
    %v345 = vunpack.c.l.b16 %v305
    %v346 = vunpack.c.l.b16 %v306
    %v347 = vunpack.c.l.b16 %v307
    %v348 = vpack.c.b16 %v333, %v332
    %v349 = vpack.c.b16 %v335, %v334
    %v350 = vpack.c.b16 %v337, %v336
    %v351 = vpack.c.b16 %v339, %v338
    %v352 = vpack.c.b16 %v341, %v340
    %v353 = vpack.c.b16 %v343, %v342
    %v354 = vpack.c.b16 %v345, %v344
    %v355 = vpack.c.b16 %v347, %v346
    %364 = vmatprep.subr.bf16.mxu0 0
    %365 = vmatpush1.bf16.msra.mxu0 %v348
    %366 = vmatprep.subr.bf16.mxu0 0
    %367 = vmatpush1.bf16.msra.mxu0 %v349
    %368 = vmatprep.subr.bf16.mxu0 0
    %369 = vmatpush1.bf16.msra.mxu0 %v350
    %370 = vmatprep.subr.bf16.mxu0 0
    %371 = vmatpush1.bf16.msra.mxu0 %v351
    %372 = vmatprep.subr.bf16.mxu0 0
    %373 = vmatpush1.bf16.msra.mxu0 %v352
    %374 = vmatprep.subr.bf16.mxu0 0
    %375 = vmatpush1.bf16.msra.mxu0 %v353
    %376 = vmatprep.subr.bf16.mxu0 0
    %377 = vmatpush1.bf16.msra.mxu0 %v354
    %378 = vmatprep.subr.bf16.mxu0 0
    %379 = vmatpush1.bf16.msra.mxu0 %v355
    %380 = vmatprep.subr.bf16.mxu0 0
    %381 = vmatpush1.bf16.msra.mxu0 0
    %382 = vmatprep.subr.bf16.mxu0 0
    %383 = vmatpush1.bf16.msra.mxu0 0
    %384 = vmatprep.subr.bf16.mxu0 0
    %385 = vmatpush1.bf16.msra.mxu0 0
    %386 = vmatprep.subr.bf16.mxu0 0
    %387 = vmatpush1.bf16.msra.mxu0 0
    %388 = vmatprep.subr.bf16.mxu0 0
    %389 = vmatpush1.bf16.msra.mxu0 0
    %390 = vmatprep.subr.bf16.mxu0 0
    %391 = vmatpush1.bf16.msra.mxu0 0
    %392 = vmatprep.subr.bf16.mxu0 0
    %393 = vmatpush1.bf16.msra.mxu0 0
    %394 = vmatprep.subr.bf16.mxu0 0
    %395 = vmatpush1.bf16.msra.mxu0 0
    %396 = vmatprep.mubr.bf16.mxu0 0
    %397 = vmatmul.mubr.bf16.gmra.mrb[0].mxu0 %v290
    %v398 = vpop.f32.mrb[0].mxu0
    %v399 = vadd.f32 %v314, %v398
    %v400 = vpop.f32.mrb[0].mxu0
    %v401 = vpop.f32.mrb[0].mxu0
    %v402 = vpop.f32.mrb[0].mxu0
    %403 = vdwg.mxu0
    %v404 = vmax.f32 %v399, 0.0
    %v405 = vadd.f32 %v404, %v289
    %v406 = vpack.c.bf16 %v405, %v405
    %v407 = vld [vmem:[#allocation7] sm:$0xf]
    %v408 = vld [vmem:[#allocation7 + $0x4] sm:$0xf]
    %v409 = vld [vmem:[#allocation7 + $0x8] sm:$0xf]
    %v410 = vld [vmem:[#allocation7 + $0xc] sm:$0xf]
    %v411 = vld [vmem:[#allocation7 + $0x10] sm:$0xf]
    %v412 = vld [vmem:[#allocation7 + $0x14] sm:$0xf]
    %v413 = vld [vmem:[#allocation7 + $0x18] sm:$0xf]
    %v414 = vld [vmem:[#allocation7 + $0x1c] sm:$0xf]
    %v415 = vld [vmem:[#allocation7 + $0x20] sm:$0xf]
    %v416 = vld [vmem:[#allocation7 + $0x24] sm:$0xf]
    %v417 = vld [vmem:[#allocation7 + $0x28] sm:$0xf]
    %v418 = vld [vmem:[#allocation7 + $0x2c] sm:$0xf]
    %v419 = vld [vmem:[#allocation7 + $0x30] sm:$0xf]
    %v420 = vld [vmem:[#allocation7 + $0x34] sm:$0xf]
    %v421 = vld [vmem:[#allocation7 + $0x38] sm:$0xf]
    %v422 = vld [vmem:[#allocation7 + $0x3c] sm:$0xf]
    %v423 = vld [vmem:[%s4] sm:$0x1]
    %v425 = vlaneseq
    %v426 = vshrl.u32 %v425, 7
    %v427 = vsub.s32 0, %v426
    %v428 = vrot.slane %v423, %v427
    %v446 = vunpack.c.l.b16 %v407
    %v447 = vunpack.c.l.b16 %v408
    %v448 = vunpack.c.l.b16 %v409
    %v449 = vunpack.c.l.b16 %v410
    %v450 = vunpack.c.l.b16 %v411
    %v451 = vunpack.c.l.b16 %v412
    %v452 = vunpack.c.l.b16 %v413
    %v453 = vunpack.c.l.b16 %v414
    %v454 = vunpack.c.l.b16 %v415
    %v455 = vunpack.c.l.b16 %v416
    %v456 = vunpack.c.l.b16 %v417
    %v457 = vunpack.c.l.b16 %v418
    %v458 = vunpack.c.l.b16 %v419
    %v459 = vunpack.c.l.b16 %v420
    %v460 = vunpack.c.l.b16 %v421
    %v461 = vunpack.c.l.b16 %v422
    %v462 = vpack.c.b16 %v447, %v446
    %v463 = vpack.c.b16 %v449, %v448
    %v464 = vpack.c.b16 %v451, %v450
    %v465 = vpack.c.b16 %v453, %v452
    %v466 = vpack.c.b16 %v455, %v454
    %v467 = vpack.c.b16 %v457, %v456
    %v468 = vpack.c.b16 %v459, %v458
    %v469 = vpack.c.b16 %v461, %v460
    %478 = vmatprep.subr.bf16.mxu0 0
    %479 = vmatpush1.bf16.msra.mxu0 %v462
    %480 = vmatprep.subr.bf16.mxu0 0
    %481 = vmatpush1.bf16.msra.mxu0 %v463
    %482 = vmatprep.subr.bf16.mxu0 0
    %483 = vmatpush1.bf16.msra.mxu0 %v464
    %484 = vmatprep.subr.bf16.mxu0 0
    %485 = vmatpush1.bf16.msra.mxu0 %v465
    %486 = vmatprep.subr.bf16.mxu0 0
    %487 = vmatpush1.bf16.msra.mxu0 %v466
    %488 = vmatprep.subr.bf16.mxu0 0
    %489 = vmatpush1.bf16.msra.mxu0 %v467
    %490 = vmatprep.subr.bf16.mxu0 0
    %491 = vmatpush1.bf16.msra.mxu0 %v468
    %492 = vmatprep.subr.bf16.mxu0 0
    %493 = vmatpush1.bf16.msra.mxu0 %v469
    %494 = vmatprep.subr.bf16.mxu0 0
    %495 = vmatpush1.bf16.msra.mxu0 0
    %496 = vmatprep.subr.bf16.mxu0 0
    %497 = vmatpush1.bf16.msra.mxu0 0
    %498 = vmatprep.subr.bf16.mxu0 0
    %499 = vmatpush1.bf16.msra.mxu0 0
    %500 = vmatprep.subr.bf16.mxu0 0
    %501 = vmatpush1.bf16.msra.mxu0 0
    %502 = vmatprep.subr.bf16.mxu0 0
    %503 = vmatpush1.bf16.msra.mxu0 0
    %504 = vmatprep.subr.bf16.mxu0 0
    %505 = vmatpush1.bf16.msra.mxu0 0
    %506 = vmatprep.subr.bf16.mxu0 0
    %507 = vmatpush1.bf16.msra.mxu0 0
    %508 = vmatprep.subr.bf16.mxu0 0
    %509 = vmatpush1.bf16.msra.mxu0 0
    %510 = vmatprep.mubr.bf16.mxu0 0
    %511 = vmatmul.mubr.bf16.gmra.mrb[0].mxu0 %v406
    %v512 = vpop.f32.mrb[0].mxu0
    %v513 = vadd.f32 %v428, %v512
    %v514 = vpop.f32.mrb[0].mxu0
    %v515 = vpop.f32.mrb[0].mxu0
    %v516 = vpop.f32.mrb[0].mxu0
    %517 = vdwg.mxu0
    %518 = vst [vmem:[#allocation8] sm:$0xff] %v513
    // Predicated region
    $region34: #{tpu_custom_call.1} parent=1 // pred_check
      _
    $region35: #{tpu_custom_call.1} parent=1 // pred_check_branch
      %520 = sbr.rel (0) target = $region37
    $region36: #{tpu_custom_call.1} parent=1 // pred_region
      %s522 = ssub.s32 128, 128
      %523 = vsyncadd [#allocation4], %s522
      %s525 = sshll.u32 [#allocation8], 4
      %s526 = int_to_ptr.vmem [resolvable:$true] %s525
      %528 = dma.vmem_to_hbm [thread:$0]  %s526, 128, %s5, [#allocation4]
    $region37: #{tpu_custom_call.1} parent=1 // pred_fallthru
      _
    // Predicated region
    $region38: #{tpu_custom_call.1} parent=1 // pred_check
      _
    $region39: #{tpu_custom_call.1} parent=1 // pred_check_branch
      %530 = sbr.rel (0) target = $region41
    $region40: #{tpu_custom_call.1} parent=1 // pred_region
      %531 = dma.done [#allocation4], 128
    $region41: #{tpu_custom_call.1} parent=1 // pred_fallthru
      _
    %532 = vsyncpa [#allocation3], 1
    %533 = vsyncpa [#allocation6], 1
    %534 = vsyncpa [#allocation4], 1

</llo_original>
